<compile_context>
chip_gen: v7x
topology: tpu7x:2x2x1
jax: 0.10.0
libtpu: 0.0.40
codegen_flags: <defaults>
</compile_context>

<pallas_src>
import math

import jax
import jax.numpy as jnp
from jax.experimental import pallas as pl
from jax.experimental.pallas import tpu as pltpu


def _round_up(x, m):
    return ((x + m - 1) // m) * m


def mlp_kernel(x_ref, w1_ref, b1_ref, w2_ref, b2_ref, out_ref, emb_ref):
    # Layer 1: emb = relu(x @ W1 + b1).
    # x arrives f32 and is cast to bf16 here (VPU) so x's HBM stream stays 4 B/elem
    # with no separate wrapper cast pass.  MXU accumulates in f32.
    x_bf16 = x_ref[...].astype(jnp.bfloat16)
    h = jnp.dot(x_bf16, w1_ref[...], preferred_element_type=jnp.float32)
    emb_f32 = jnp.maximum(h + b1_ref[...], 0.0)       # b1 is (1, emb) -> broadcast
    emb_bf16 = emb_f32.astype(jnp.bfloat16)
    emb_ref[...] = emb_bf16                           # bf16 writeback (half the bytes)

    # Layer 2: out = emb @ W2 + b2.  Reuse the bf16 emb for the MXU; W2/out are
    # lane-padded to a multiple of 128 so stores are unmasked.
    o = jnp.dot(emb_bf16, w2_ref[...], preferred_element_type=jnp.float32)
    out_ref[...] = (o + b2_ref[...]).astype(out_ref.dtype)


def prepare_mlpnet_params(w1, b1, w2, b2):
    """One-time weight prep (bf16 cast, lane padding, bias reshape).

    Hoisted out of the per-call path so inference loops don't re-read/re-write
    the weights from HBM on every forward.
    w1: [dim, emb_size], b1: [emb_size], w2: [emb_size, n_label], b2: [n_label].
    """
    dim, emb_size = w1.shape
    n_label = w2.shape[1]
    n_pad = _round_up(max(n_label, 128), 128)         # lane-dense output columns

    w1_c = w1.astype(jnp.bfloat16)
    w2_c = jnp.pad(w2, ((0, 0), (0, n_pad - n_label))).astype(jnp.bfloat16)
    b1_2d = b1.reshape(1, emb_size).astype(jnp.float32)
    b2_2d = jnp.pad(b2, (0, n_pad - n_label)).reshape(1, n_pad).astype(jnp.float32)

    return dict(w1=w1_c, b1=b1_2d, w2=w2_c, b2=b2_2d,
                dim=int(dim), emb_size=int(emb_size),
                n_label=int(n_label), n_pad=int(n_pad))


def mlpnet_forward(x, params, *, batch_tile=1024, out_dtype=jnp.bfloat16):
    """x: [B, C, H, W] (or [B, D]) float32. Returns (out [B, n_label], emb [B, emb_size]).

    Precision contract: matmuls use bf16 operands with f32 accumulation; the
    returned out/emb are bf16 unless out_dtype=jnp.float32 is requested.
    """
    w1, b1, w2, b2 = params["w1"], params["b1"], params["w2"], params["b2"]
    D, emb_size = params["dim"], params["emb_size"]
    n_label, n_pad = params["n_label"], params["n_pad"]

    B = x.shape[0]
    assert math.prod(x.shape[1:]) == D, "input feature size mismatch"
    x2d = x.reshape(B, D).astype(jnp.float32)         # x stays f32; kernel casts

    # ---- batch tile selection ------------------------------------------------
    # Per-row VMEM bytes for the double-buffered activation tiles:
    #   x tile f32 + emb tile bf16 + out tile bf16.
    act_row = D * 4 + emb_size * 2 + n_pad * 2
    act_budget = 16 << 20                              # activation-tile budget (all gens)
    max_tb = max(16, ((act_budget // (2 * act_row)) // 16) * 16)

    tb = min(batch_tile, max_tb, _round_up(B, 16))
    if B >= 32:
        # Keep >= 2 grid steps so ("parallel",) shards across v7x's two TCs.
        tb = min(tb, _round_up(pl.cdiv(B, 2), 16))
    tb = max(16, (tb // 16) * 16)                      # bf16 sublane packing (16 rows)

    grid = (pl.cdiv(B, tb),)                           # last block masked; no jnp.pad of x

    # ---- VMEM accounting (weights resident via constant index_map) -----------
    weight_vmem = 2 * ((D * emb_size + emb_size * n_pad) * 2 + (emb_size + n_pad) * 4)
    act_vmem = 2 * tb * act_row
    if weight_vmem + 2 * 16 * act_row > (40 << 20):
        # TODO(synk): K-tiled fallback (extra 'arbitrary' axis + f32 accumulator).
        raise NotImplementedError("resident-weight path needs K-tiling for this size")
    vmem_limit = max(32 << 20, min(weight_vmem + act_vmem + (2 << 20), 48 << 20))

    # ---- cost hint for XLA scheduling ----------------------------------------
    flops = 2 * B * D * emb_size + 2 * B * emb_size * n_pad
    bytes_accessed = (B * D * 4                        # x read (f32)
                      + w1.size * 2 + w2.size * 2      # weights (bf16, read once)
                      + b1.size * 4 + b2.size * 4
                      + B * emb_size * 2               # emb writeback (bf16)
                      + B * n_pad * 2)                 # out writeback (bf16)
    cost = pl.CostEstimate(flops=flops, transcendentals=0,
                           bytes_accessed=bytes_accessed)

    out_p, emb_p = pl.pallas_call(
        mlp_kernel,
        out_shape=(
            jax.ShapeDtypeStruct((B, n_pad), jnp.bfloat16),
            jax.ShapeDtypeStruct((B, emb_size), jnp.bfloat16),
        ),
        grid_spec=pltpu.PrefetchScalarGridSpec(
            num_scalar_prefetch=0,
            grid=grid,
            in_specs=[
                pl.BlockSpec((tb, D), lambda i: (i, 0)),              # x tile (f32)
                # constant block index -> weights/biases stay resident in VMEM
                pl.BlockSpec((D, emb_size), lambda i: (0, 0)),        # W1 (bf16)
                pl.BlockSpec((1, emb_size), lambda i: (0, 0)),        # b1 (f32)
                pl.BlockSpec((emb_size, n_pad), lambda i: (0, 0)),    # W2 (bf16)
                pl.BlockSpec((1, n_pad), lambda i: (0, 0)),           # b2 (f32)
            ],
            out_specs=[
                pl.BlockSpec((tb, n_pad), lambda i: (i, 0)),          # out tile (bf16)
                pl.BlockSpec((tb, emb_size), lambda i: (i, 0)),       # emb tile (bf16)
            ],
        ),
        compiler_params=pltpu.CompilerParams(
            dimension_semantics=("parallel",),
            vmem_limit_bytes=int(vmem_limit),
        ),
        cost_estimate=cost,
    )(x2d, w1, b1, w2, b2)

    out = out_p[:, :n_label]
    emb = emb_p
    if out_dtype != jnp.bfloat16:
        out = out.astype(out_dtype)
        emb = emb.astype(out_dtype)
    return out, emb


def init_params(key, dim, emb_size, n_label):
    # Deterministic init mimicking nn.Linear's U(-1/sqrt(fan_in), 1/sqrt(fan_in)).
    k1, k2, k3, k4 = jax.random.split(key, 4)
    bound1 = 1.0 / math.sqrt(dim)
    bound2 = 1.0 / math.sqrt(emb_size)
    # Stored pre-transposed: [in_features, out_features]
    w1 = jax.random.uniform(k1, (dim, emb_size), jnp.float32, -bound1, bound1)
    b1 = jax.random.uniform(k2, (emb_size,), jnp.float32, -bound1, bound1)
    w2 = jax.random.uniform(k3, (emb_size, n_label), jnp.float32, -bound2, bound2)
    b2 = jax.random.uniform(k4, (n_label,), jnp.float32, -bound2, bound2)
    return w1, b1, w2, b2


if __name__ == "__main__":
    key = jax.random.PRNGKey(0)
    kx, kp = jax.random.split(key)

    # Shapes consistent with the module: dim=(4,16,16) -> flattened 1024.
    C, H, W = 4, 16, 16
    dim = C * H * W
    emb_size, n_label = 256, 10

    w1, b1, w2, b2 = init_params(kp, dim, emb_size, n_label)
    params = prepare_mlpnet_params(w1, b1, w2, b2)        # one-time weight prep

    def ref_fwd(x):
        # Pure-JAX reference with the same bf16-operand / f32-accumulate contract.
        xb = x.reshape(x.shape[0], dim)
        emb_f = jnp.maximum(
            jnp.dot(xb.astype(jnp.bfloat16), w1.astype(jnp.bfloat16),
                    preferred_element_type=jnp.float32) + b1, 0.0)
        emb_b = emb_f.astype(jnp.bfloat16)
        out_f = jnp.dot(emb_b, w2.astype(jnp.bfloat16),
                        preferred_element_type=jnp.float32) + b2
        return out_f, emb_f

    # Test a single-tile batch (B=2) and a multi-tile, non-divisible batch (B=40).
    for B in (2, 40):
        x = jax.random.normal(jax.random.fold_in(kx, B), (B, C, H, W), jnp.float32)
        out, emb = mlpnet_forward(x, params)
        out, emb = jax.block_until_ready((out, emb))
        assert out.shape == (B, n_label) and emb.shape == (B, emb_size)
        assert out.dtype == jnp.bfloat16 and emb.dtype == jnp.bfloat16

        out_r, emb_r = ref_fwd(x)
        assert jnp.allclose(out.astype(jnp.float32), out_r, atol=2e-2, rtol=2e-2)
        assert jnp.allclose(emb.astype(jnp.float32), emb_r, atol=2e-2, rtol=2e-2)

        # Loose sanity check against full-f32 math (bf16 rounding tolerance).
        x2d = x.reshape(B, dim)
        emb_f32 = jnp.maximum(x2d @ w1 + b1, 0.0)
        out_f32 = emb_f32 @ w2 + b2
        assert jnp.allclose(out.astype(jnp.float32), out_f32, atol=8e-2, rtol=8e-2)
        assert jnp.allclose(emb.astype(jnp.float32), emb_f32, atol=8e-2, rtol=8e-2)

    print("KERNEL_OK")
</pallas_src>

<mosaic_0001>
module attributes {stable_mosaic.version = 11 : i64} {
  func.func @mlp_kernel(%arg0: i32, %arg1: memref<16x1024xf32, #tpu.memory_space<vmem>>, %arg2: memref<1024x256xbf16, #tpu.memory_space<vmem>>, %arg3: memref<1x256xf32, #tpu.memory_space<vmem>>, %arg4: memref<256x128xbf16, #tpu.memory_space<vmem>>, %arg5: memref<1x128xf32, #tpu.memory_space<vmem>>, %arg6: memref<16x128xbf16, #tpu.memory_space<vmem>>, %arg7: memref<16x256xbf16, #tpu.memory_space<vmem>>) attributes {dimension_semantics = [#tpu.dimension_semantics<parallel>], iteration_bounds = array<i64: 1>, scalar_prefetch = 0 : i64, scratch_operands = 0 : i64, tpu.core_type = #tpu.core_type<tc>, window_params = [{transform_indices = @transform_0, window_bounds = array<i64: 16, 1024>}, {pipeline_mode = #tpu.pipeline_mode<synchronous>, transform_indices = @transform_1, window_bounds = array<i64: 1024, 256>}, {pipeline_mode = #tpu.pipeline_mode<synchronous>, transform_indices = @transform_2, window_bounds = array<i64: 1, 256>}, {pipeline_mode = #tpu.pipeline_mode<synchronous>, transform_indices = @transform_3, window_bounds = array<i64: 256, 128>}, {pipeline_mode = #tpu.pipeline_mode<synchronous>, transform_indices = @transform_4, window_bounds = array<i64: 1, 128>}, {transform_indices = @transform_5, window_bounds = array<i64: 16, 128>}, {transform_indices = @transform_6, window_bounds = array<i64: 16, 256>}]} {
    %c0 = arith.constant 0 : index
    %c0_0 = arith.constant 0 : index
    %0 = vector.load %arg1[%c0, %c0_0] : memref<16x1024xf32, #tpu.memory_space<vmem>>, vector<16x1024xf32>
    %1 = arith.truncf %0 : vector<16x1024xf32> to vector<16x1024xbf16>
    %c0_1 = arith.constant 0 : index
    %c0_2 = arith.constant 0 : index
    %2 = vector.load %arg2[%c0_1, %c0_2] : memref<1024x256xbf16, #tpu.memory_space<vmem>>, vector<1024x256xbf16>
    %cst = arith.constant dense<0.000000e+00> : vector<16x256xf32>
    %3 = tpu.matmul %1, %2, %cst {dimension_numbers = #tpu.dot_dimension_numbers<[1], [0], [0], [1], [0, 0, 1, 1], [], []>} : vector<16x1024xbf16>, vector<1024x256xbf16>, vector<16x256xf32> -> vector<16x256xf32>
    %c0_3 = arith.constant 0 : index
    %c0_4 = arith.constant 0 : index
    %4 = vector.load %arg3[%c0_3, %c0_4] : memref<1x256xf32, #tpu.memory_space<vmem>>, vector<1x256xf32>
    %5 = vector.broadcast %4 : vector<1x256xf32> to vector<16x256xf32>
    %6 = arith.addf %3, %5 : vector<16x256xf32>
    %cst_5 = arith.constant 0.000000e+00 : f32
    %7 = vector.broadcast %cst_5 : f32 to vector<16x256xf32>
    %8 = arith.maximumf %6, %7 : vector<16x256xf32>
    %9 = arith.truncf %8 : vector<16x256xf32> to vector<16x256xbf16>
    %c0_6 = arith.constant 0 : index
    %c0_7 = arith.constant 0 : index
    %10 = vector.load %arg7[%c0_6, %c0_7] : memref<16x256xbf16, #tpu.memory_space<vmem>>, vector<16x256xbf16>
    tpu.vector_store %arg7[%c0_6, %c0_7], %9 {strides = array<i32>} : memref<16x256xbf16, #tpu.memory_space<vmem>>, vector<16x256xbf16>,
    %c0_8 = arith.constant 0 : index
    %c0_9 = arith.constant 0 : index
    %11 = vector.load %arg4[%c0_8, %c0_9] : memref<256x128xbf16, #tpu.memory_space<vmem>>, vector<256x128xbf16>
    %cst_10 = arith.constant dense<0.000000e+00> : vector<16x128xf32>
    %12 = tpu.matmul %9, %11, %cst_10 {dimension_numbers = #tpu.dot_dimension_numbers<[1], [0], [0], [1], [0, 0, 1, 1], [], []>} : vector<16x256xbf16>, vector<256x128xbf16>, vector<16x128xf32> -> vector<16x128xf32>
    %c0_11 = arith.constant 0 : index
    %c0_12 = arith.constant 0 : index
    %13 = vector.load %arg5[%c0_11, %c0_12] : memref<1x128xf32, #tpu.memory_space<vmem>>, vector<1x128xf32>
    %14 = vector.broadcast %13 : vector<1x128xf32> to vector<16x128xf32>
    %15 = arith.addf %12, %14 : vector<16x128xf32>
    %16 = arith.truncf %15 : vector<16x128xf32> to vector<16x128xbf16>
    %c0_13 = arith.constant 0 : index
    %c0_14 = arith.constant 0 : index
    %17 = vector.load %arg6[%c0_13, %c0_14] : memref<16x128xbf16, #tpu.memory_space<vmem>>, vector<16x128xbf16>
    tpu.vector_store %arg6[%c0_13, %c0_14], %16 {strides = array<i32>} : memref<16x128xbf16, #tpu.memory_space<vmem>>, vector<16x128xbf16>,
    return
  }
  func.func @transform_0(%arg0: i32) -> (i32, i32) {
    %c0_i32 = arith.constant 0 : i32
    %c0_i32_0 = arith.constant 0 : i32
    return %arg0, %c0_i32 : i32, i32
  }
  func.func @transform_1(%arg0: i32) -> (i32, i32) {
    %c0_i32 = arith.constant 0 : i32
    %c0_i32_0 = arith.constant 0 : i32
    %c0_i32_1 = arith.constant 0 : i32
    return %c0_i32, %c0_i32_0 : i32, i32
  }
  func.func @transform_2(%arg0: i32) -> (i32, i32) {
    %c0_i32 = arith.constant 0 : i32
    %c0_i32_0 = arith.constant 0 : i32
    %c0_i32_1 = arith.constant 0 : i32
    return %c0_i32, %c0_i32_0 : i32, i32
  }
  func.func @transform_3(%arg0: i32) -> (i32, i32) {
    %c0_i32 = arith.constant 0 : i32
    %c0_i32_0 = arith.constant 0 : i32
    %c0_i32_1 = arith.constant 0 : i32
    return %c0_i32, %c0_i32_0 : i32, i32
  }
  func.func @transform_4(%arg0: i32) -> (i32, i32) {
    %c0_i32 = arith.constant 0 : i32
    %c0_i32_0 = arith.constant 0 : i32
    %c0_i32_1 = arith.constant 0 : i32
    return %c0_i32, %c0_i32_0 : i32, i32
  }
  func.func @transform_5(%arg0: i32) -> (i32, i32) {
    %c0_i32 = arith.constant 0 : i32
    %c0_i32_0 = arith.constant 0 : i32
    return %arg0, %c0_i32 : i32, i32
  }
  func.func @transform_6(%arg0: i32) -> (i32, i32) {
    %c0_i32 = arith.constant 0 : i32
    %c0_i32_0 = arith.constant 0 : i32
    return %arg0, %c0_i32 : i32, i32
  }
}

</mosaic_0001>

<llo_original>
// kernel: tpu_custom_call.1
$region0: #{tpu_custom_call.1}
  #allocation0 [shape = 'u32[]', space=smem, size = 0x4, offset = 0x4, fixed_abs, tag = 'smem constant byte address 0x4 - core index']
  #allocation1 [shape = 'u32[144,128]{1,0:T(1,128)}', space=vmem, size = 0x12000, scoped, tag = 'internal scratch']
  %s0 = inlined_call_operand.hbm [shape: f32[2,1024], index: 0, kind: input, shape index: {}]
  %s1 = inlined_call_operand.hbm [shape: bf16[1024,256], index: 1, kind: input, shape index: {}]
  %s2 = inlined_call_operand.vmem [shape: f32[1,256], index: 2, kind: input, shape index: {}]
  %s3 = inlined_call_operand.hbm [shape: bf16[256,128], index: 3, kind: input, shape index: {}]
  %s4 = inlined_call_operand.vmem [shape: f32[1,128], index: 4, kind: input, shape index: {}]
  %s5 = inlined_call_operand.hbm [shape: bf16[2,128], index: 5, kind: output, shape index: {0}]
  %s6 = inlined_call_operand.hbm [shape: bf16[2,256], index: 6, kind: output, shape index: {1}]
  %7 = xla_tuple %s5, %s6
  %s8 = sld [smem:[#allocation0]]
  $region50: #{tpu_custom_call.1} parent=0
    _
  %s10 = ssub.s32 1, %s8
  %s11 = scalar_select 0, %s10, %s8
  $region1: #{tpu_custom_call.1} parent=0
    #allocation2 [shape = 'u8[65536]{0}', space=vmem, size = 0x10000, scoped, tag = 'input window, operand 0, single buffered']
    #allocation3 [shape = 's32[1]{0}', space=sflag, size = 0x4, scoped, tag = 'scoped memory for tpu_custom_call.1']
    #allocation4 [shape = 's32[1]{0}', space=sflag, size = 0x4, scoped, tag = 'scoped memory for tpu_custom_call.1']
    #allocation5 [shape = 'u8[524288]{0}', space=vmem, size = 0x80000, scoped, tag = 'input window, operand 1, single buffered']
    #allocation6 [shape = 's32[1]{0}', space=sflag, size = 0x4, scoped, tag = 'scoped memory for tpu_custom_call.1']
    #allocation7 [shape = 'u8[65536]{0}', space=vmem, size = 0x10000, scoped, tag = 'input window, operand 3, single buffered']
    #allocation8 [shape = 'u8[4096]{0}', space=vmem, size = 0x1000, scoped, tag = 'output window, operand 0, single buffered']
    #allocation9 [shape = 'u8[8192]{0}', space=vmem, size = 0x2000, scoped, tag = 'output window, operand 1, single buffered']
    #allocation10 [shape = 's32[1]{0}', space=sflag, size = 0x4, scoped, tag = 'scoped memory for tpu_custom_call.1']
    %12 = vsyncpa [#allocation3], 0
    %13 = vsyncpa [#allocation6], 0
    %14 = vsyncpa [#allocation4], 0
    %15 = vsyncpa [#allocation10], 0
    // Predicated region
    $region2: #{tpu_custom_call.1} parent=1 // pred_check
      _
    $region3: #{tpu_custom_call.1} parent=1 // pred_check_branch
      %17 = sbr.rel (0) target = $region5
    $region4: #{tpu_custom_call.1} parent=1 // pred_region
      %s19 = ssub.s32 2048, 256
      %20 = vsyncadd [#allocation3], %s19
      %s21 = sshll.u32 [#allocation2], 4
      %s22 = int_to_ptr.vmem [resolvable:$true] %s21
      %27 = dma.hbm_to_vmem [thread:$0]  %s0, 256, %s22, [#allocation3], 256, 256, 16
    $region5: #{tpu_custom_call.1} parent=1 // pred_fallthru
      _
    // Predicated region
    $region6: #{tpu_custom_call.1} parent=1 // pred_check
      _
    $region7: #{tpu_custom_call.1} parent=1 // pred_check_branch
      %29 = sbr.rel (0) target = $region9
    $region8: #{tpu_custom_call.1} parent=1 // pred_region
      %s31 = ssub.s32 16384, 16384
      %32 = vsyncadd [#allocation6], %s31
      %s33 = sshll.u32 [#allocation5], 4
      %s34 = int_to_ptr.vmem [resolvable:$true] %s33
      %39 = dma.hbm_to_vmem [thread:$0]  %s1, 16384, %s34, [#allocation6], 128, 128, 8
    $region9: #{tpu_custom_call.1} parent=1 // pred_fallthru
      _
    // Predicated region
    $region10: #{tpu_custom_call.1} parent=1 // pred_check
      _
    $region11: #{tpu_custom_call.1} parent=1 // pred_check_branch
      %41 = sbr.rel (0) target = $region13
    $region12: #{tpu_custom_call.1} parent=1 // pred_region
      _
    $region13: #{tpu_custom_call.1} parent=1 // pred_fallthru
      _
    // Predicated region
    $region14: #{tpu_custom_call.1} parent=1 // pred_check
      _
    $region15: #{tpu_custom_call.1} parent=1 // pred_check_branch
      %43 = sbr.rel (0) target = $region17
    $region16: #{tpu_custom_call.1} parent=1 // pred_region
      %s45 = ssub.s32 2048, 2048
      %46 = vsyncadd [#allocation6], %s45
      %s47 = sshll.u32 [#allocation7], 4
      %s48 = int_to_ptr.vmem [resolvable:$true] %s47
      %53 = dma.hbm_to_vmem [thread:$0]  %s3, 2048, %s48, [#allocation6], 64, 64, 4
    $region17: #{tpu_custom_call.1} parent=1 // pred_fallthru
      _
    // Predicated region
    $region18: #{tpu_custom_call.1} parent=1 // pred_check
      _
    $region19: #{tpu_custom_call.1} parent=1 // pred_check_branch
      %55 = sbr.rel (0) target = $region21
    $region20: #{tpu_custom_call.1} parent=1 // pred_region
      _
    $region21: #{tpu_custom_call.1} parent=1 // pred_fallthru
      _
    // Predicated region
    $region22: #{tpu_custom_call.1} parent=1 // pred_check
      _
    $region23: #{tpu_custom_call.1} parent=1 // pred_check_branch
      %57 = sbr.rel (0) target = $region25
    $region24: #{tpu_custom_call.1} parent=1 // pred_region
      %58 = dma.done [#allocation3], 2048
    $region25: #{tpu_custom_call.1} parent=1 // pred_fallthru
      _
    // Predicated region
    $region26: #{tpu_custom_call.1} parent=1 // pred_check
      _
    $region27: #{tpu_custom_call.1} parent=1 // pred_check_branch
      %60 = sbr.rel (0) target = $region29
    $region28: #{tpu_custom_call.1} parent=1 // pred_region
      %61 = dma.done [#allocation6], 16384
    $region29: #{tpu_custom_call.1} parent=1 // pred_fallthru
      _
    // Predicated region
    $region30: #{tpu_custom_call.1} parent=1 // pred_check
      _
    $region31: #{tpu_custom_call.1} parent=1 // pred_check_branch
      %63 = sbr.rel (0) target = $region33
    $region32: #{tpu_custom_call.1} parent=1 // pred_region
      %64 = dma.done [#allocation6], 2048
    $region33: #{tpu_custom_call.1} parent=1 // pred_fallthru
      _
    %v66 = vld [vmem:[#allocation2] sm:$0xff]
    %v67 = vld [vmem:[#allocation2 + $0x8] sm:$0xff]
    %v68 = vld [vmem:[#allocation2 + $0x10] sm:$0xff]
    %v69 = vld [vmem:[#allocation2 + $0x18] sm:$0xff]
    %v70 = vld [vmem:[#allocation2 + $0x20] sm:$0xff]
    %v71 = vld [vmem:[#allocation2 + $0x28] sm:$0xff]
    %v72 = vld [vmem:[#allocation2 + $0x30] sm:$0xff]
    %v73 = vld [vmem:[#allocation2 + $0x38] sm:$0xff]
    %v74 = vld [vmem:[#allocation2 + $0x40] sm:$0xff]
    %v75 = vld [vmem:[#allocation2 + $0x48] sm:$0xff]
    %v76 = vld [vmem:[#allocation2 + $0x50] sm:$0xff]
    %v77 = vld [vmem:[#allocation2 + $0x58] sm:$0xff]
    %v78 = vld [vmem:[#allocation2 + $0x60] sm:$0xff]
    %v79 = vld [vmem:[#allocation2 + $0x68] sm:$0xff]
    %v80 = vld [vmem:[#allocation2 + $0x70] sm:$0xff]
    %v81 = vld [vmem:[#allocation2 + $0x78] sm:$0xff]
    %v98 = vcombine.low %v66, %v68
    %v99 = vcombine.high %v66, %v68
    %v100 = vcombine.low %v70, %v72
    %v101 = vcombine.high %v70, %v72
    %v103 = vunpack.c.l.s4 1983009808
    %v104 = vunpack.c.0.s8 %v103
    %v105 = vlaneseq
    %v106 = vshrl.u32 %v105, 7
    %v107 = vsub.s32 %v104, %v106
    %v108 = vrot.slane %v98, %v107
    %v110 = vunpack.c.l.s4 1983009808
    %v111 = vunpack.c.0.s8 %v110
    %v112 = vlaneseq
    %v113 = vshrl.u32 %v112, 7
    %v114 = vsub.s32 %v111, %v113
    %v115 = vrot.slane %v99, %v114
    %v117 = vunpack.c.l.s4 1983009808
    %v118 = vunpack.c.0.s8 %v117
    %v119 = vlaneseq
    %v120 = vshrl.u32 %v119, 7
    %v121 = vsub.s32 %v118, %v120
    %v122 = vrot.slane %v100, %v121
    %v124 = vunpack.c.l.s4 1983009808
    %v125 = vunpack.c.0.s8 %v124
    %v126 = vlaneseq
    %v127 = vshrl.u32 %v126, 7
    %v128 = vsub.s32 %v125, %v127
    %v129 = vrot.slane %v101, %v128
    %v130 = vcombine.low %v108, %v122
    %v131 = vcombine.high %v108, %v122
    %v132 = vcombine.low %v115, %v129
    %v133 = vcombine.high %v115, %v129
    %v134 = vcombine.low %v67, %v69
    %v135 = vcombine.high %v67, %v69
    %v136 = vcombine.low %v71, %v73
    %v137 = vcombine.high %v71, %v73
    %v139 = vunpack.c.l.s4 1983009808
    %v140 = vunpack.c.0.s8 %v139
    %v141 = vlaneseq
    %v142 = vshrl.u32 %v141, 7
    %v143 = vsub.s32 %v140, %v142
    %v144 = vrot.slane %v134, %v143
    %v146 = vunpack.c.l.s4 1983009808
    %v147 = vunpack.c.0.s8 %v146
    %v148 = vlaneseq
    %v149 = vshrl.u32 %v148, 7
    %v150 = vsub.s32 %v147, %v149
    %v151 = vrot.slane %v135, %v150
    %v153 = vunpack.c.l.s4 1983009808
    %v154 = vunpack.c.0.s8 %v153
    %v155 = vlaneseq
    %v156 = vshrl.u32 %v155, 7
    %v157 = vsub.s32 %v154, %v156
    %v158 = vrot.slane %v136, %v157
    %v160 = vunpack.c.l.s4 1983009808
    %v161 = vunpack.c.0.s8 %v160
    %v162 = vlaneseq
    %v163 = vshrl.u32 %v162, 7
    %v164 = vsub.s32 %v161, %v163
    %v165 = vrot.slane %v137, %v164
    %v166 = vcombine.low %v144, %v158
    %v167 = vcombine.high %v144, %v158
    %v168 = vcombine.low %v151, %v165
    %v169 = vcombine.high %v151, %v165
    %v170 = vcombine.low %v74, %v76
    %v171 = vcombine.high %v74, %v76
    %v172 = vcombine.low %v78, %v80
    %v173 = vcombine.high %v78, %v80
    %v175 = vunpack.c.l.s4 1983009808
    %v176 = vunpack.c.0.s8 %v175
    %v177 = vlaneseq
    %v178 = vshrl.u32 %v177, 7
    %v179 = vsub.s32 %v176, %v178
    %v180 = vrot.slane %v170, %v179
    %v182 = vunpack.c.l.s4 1983009808
    %v183 = vunpack.c.0.s8 %v182
    %v184 = vlaneseq
    %v185 = vshrl.u32 %v184, 7
    %v186 = vsub.s32 %v183, %v185
    %v187 = vrot.slane %v171, %v186
    %v189 = vunpack.c.l.s4 1983009808
    %v190 = vunpack.c.0.s8 %v189
    %v191 = vlaneseq
    %v192 = vshrl.u32 %v191, 7
    %v193 = vsub.s32 %v190, %v192
    %v194 = vrot.slane %v172, %v193
    %v196 = vunpack.c.l.s4 1983009808
    %v197 = vunpack.c.0.s8 %v196
    %v198 = vlaneseq
    %v199 = vshrl.u32 %v198, 7
    %v200 = vsub.s32 %v197, %v199
    %v201 = vrot.slane %v173, %v200
    %v202 = vcombine.low %v180, %v194
    %v203 = vcombine.high %v180, %v194
    %v204 = vcombine.low %v187, %v201
    %v205 = vcombine.high %v187, %v201
    %v206 = vcombine.low %v75, %v77
    %v207 = vcombine.high %v75, %v77
    %v208 = vcombine.low %v79, %v81
    %v209 = vcombine.high %v79, %v81
    %v211 = vunpack.c.l.s4 1983009808
    %v212 = vunpack.c.0.s8 %v211
    %v213 = vlaneseq
    %v214 = vshrl.u32 %v213, 7
    %v215 = vsub.s32 %v212, %v214
    %v216 = vrot.slane %v206, %v215
    %v218 = vunpack.c.l.s4 1983009808
    %v219 = vunpack.c.0.s8 %v218
    %v220 = vlaneseq
    %v221 = vshrl.u32 %v220, 7
    %v222 = vsub.s32 %v219, %v221
    %v223 = vrot.slane %v207, %v222
    %v225 = vunpack.c.l.s4 1983009808
    %v226 = vunpack.c.0.s8 %v225
    %v227 = vlaneseq
    %v228 = vshrl.u32 %v227, 7
    %v229 = vsub.s32 %v226, %v228
    %v230 = vrot.slane %v208, %v229
    %v232 = vunpack.c.l.s4 1983009808
    %v233 = vunpack.c.0.s8 %v232
    %v234 = vlaneseq
    %v235 = vshrl.u32 %v234, 7
    %v236 = vsub.s32 %v233, %v235
    %v237 = vrot.slane %v209, %v236
    %v238 = vcombine.low %v216, %v230
    %v239 = vcombine.high %v216, %v230
    %v240 = vcombine.low %v223, %v237
    %v241 = vcombine.high %v223, %v237
    %v258 = vpack.c.bf16 %v202, %v130
    %v259 = vpack.c.bf16 %v203, %v131
    %v260 = vpack.c.bf16 %v204, %v132
    %v261 = vpack.c.bf16 %v205, %v133
    %v262 = vpack.c.bf16 %v238, %v166
    %v263 = vpack.c.bf16 %v239, %v167
    %v264 = vpack.c.bf16 %v240, %v168
    %v265 = vpack.c.bf16 %v241, %v169
    %v266 = vld [vmem:[#allocation5] sm:$0xff]
    %v267 = vld [vmem:[#allocation5 + $0x8] sm:$0xff]
    %v268 = vld [vmem:[#allocation5 + $0x10] sm:$0xff]
    %v269 = vld [vmem:[#allocation5 + $0x18] sm:$0xff]
    %v270 = vld [vmem:[#allocation5 + $0x20] sm:$0xff]
    %v271 = vld [vmem:[#allocation5 + $0x28] sm:$0xff]
    %v272 = vld [vmem:[#allocation5 + $0x30] sm:$0xff]
    %v273 = vld [vmem:[#allocation5 + $0x38] sm:$0xff]
    %v274 = vld [vmem:[#allocation5 + $0x40] sm:$0xff]
    %v275 = vld [vmem:[#allocation5 + $0x48] sm:$0xff]
    %v276 = vld [vmem:[#allocation5 + $0x50] sm:$0xff]
    %v277 = vld [vmem:[#allocation5 + $0x58] sm:$0xff]
    %v278 = vld [vmem:[#allocation5 + $0x60] sm:$0xff]
    %v279 = vld [vmem:[#allocation5 + $0x68] sm:$0xff]
    %v280 = vld [vmem:[#allocation5 + $0x70] sm:$0xff]
    %v281 = vld [vmem:[#allocation5 + $0x78] sm:$0xff]
    %v282 = vld [vmem:[#allocation5 + $0x80] sm:$0xff]
    %v283 = vld [vmem:[#allocation5 + $0x88] sm:$0xff]
    %v284 = vld [vmem:[#allocation5 + $0x90] sm:$0xff]
    %v285 = vld [vmem:[#allocation5 + $0x98] sm:$0xff]
    %v286 = vld [vmem:[#allocation5 + $0xa0] sm:$0xff]
    %v287 = vld [vmem:[#allocation5 + $0xa8] sm:$0xff]
    %v288 = vld [vmem:[#allocation5 + $0xb0] sm:$0xff]
    %v289 = vld [vmem:[#allocation5 + $0xb8] sm:$0xff]
    %v290 = vld [vmem:[#allocation5 + $0xc0] sm:$0xff]
    %v291 = vld [vmem:[#allocation5 + $0xc8] sm:$0xff]
    %v292 = vld [vmem:[#allocation5 + $0xd0] sm:$0xff]
    %v293 = vld [vmem:[#allocation5 + $0xd8] sm:$0xff]
    %v294 = vld [vmem:[#allocation5 + $0xe0] sm:$0xff]
    %v295 = vld [vmem:[#allocation5 + $0xe8] sm:$0xff]
    %v296 = vld [vmem:[#allocation5 + $0xf0] sm:$0xff]
    %v297 = vld [vmem:[#allocation5 + $0xf8] sm:$0xff]
    %v298 = vld [vmem:[#allocation5 + $0x100] sm:$0xff]
    %v299 = vld [vmem:[#allocation5 + $0x108] sm:$0xff]
    %v300 = vld [vmem:[#allocation5 + $0x110] sm:$0xff]
    %v301 = vld [vmem:[#allocation5 + $0x118] sm:$0xff]
    %v302 = vld [vmem:[#allocation5 + $0x120] sm:$0xff]
    %v303 = vld [vmem:[#allocation5 + $0x128] sm:$0xff]
    %v304 = vld [vmem:[#allocation5 + $0x130] sm:$0xff]
    %v305 = vld [vmem:[#allocation5 + $0x138] sm:$0xff]
    %v306 = vld [vmem:[#allocation5 + $0x140] sm:$0xff]
    %v307 = vld [vmem:[#allocation5 + $0x148] sm:$0xff]
    %v308 = vld [vmem:[#allocation5 + $0x150] sm:$0xff]
    %v309 = vld [vmem:[#allocation5 + $0x158] sm:$0xff]
    %v310 = vld [vmem:[#allocation5 + $0x160] sm:$0xff]
    %v311 = vld [vmem:[#allocation5 + $0x168] sm:$0xff]
    %v312 = vld [vmem:[#allocation5 + $0x170] sm:$0xff]
    %v313 = vld [vmem:[#allocation5 + $0x178] sm:$0xff]
    %v314 = vld [vmem:[#allocation5 + $0x180] sm:$0xff]
    %v315 = vld [vmem:[#allocation5 + $0x188] sm:$0xff]
    %v316 = vld [vmem:[#allocation5 + $0x190] sm:$0xff]
    %v317 = vld [vmem:[#allocation5 + $0x198] sm:$0xff]
    %v318 = vld [vmem:[#allocation5 + $0x1a0] sm:$0xff]
    %v319 = vld [vmem:[#allocation5 + $0x1a8] sm:$0xff]
    %v320 = vld [vmem:[#allocation5 + $0x1b0] sm:$0xff]
    %v321 = vld [vmem:[#allocation5 + $0x1b8] sm:$0xff]
    %v322 = vld [vmem:[#allocation5 + $0x1c0] sm:$0xff]
    %v323 = vld [vmem:[#allocation5 + $0x1c8] sm:$0xff]
    %v324 = vld [vmem:[#allocation5 + $0x1d0] sm:$0xff]
    %v325 = vld [vmem:[#allocation5 + $0x1d8] sm:$0xff]
    %v326 = vld [vmem:[#allocation5 + $0x1e0] sm:$0xff]
    %v327 = vld [vmem:[#allocation5 + $0x1e8] sm:$0xff]
    %v328 = vld [vmem:[#allocation5 + $0x1f0] sm:$0xff]
    %v329 = vld [vmem:[#allocation5 + $0x1f8] sm:$0xff]
    %v330 = vld [vmem:[#allocation5 + $0x200] sm:$0xff]
    %v331 = vld [vmem:[#allocation5 + $0x208] sm:$0xff]
    %v332 = vld [vmem:[#allocation5 + $0x210] sm:$0xff]
    %v333 = vld [vmem:[#allocation5 + $0x218] sm:$0xff]
    %v334 = vld [vmem:[#allocation5 + $0x220] sm:$0xff]
    %v335 = vld [vmem:[#allocation5 + $0x228] sm:$0xff]
    %v336 = vld [vmem:[#allocation5 + $0x230] sm:$0xff]
    %v337 = vld [vmem:[#allocation5 + $0x238] sm:$0xff]
    %v338 = vld [vmem:[#allocation5 + $0x240] sm:$0xff]
    %v339 = vld [vmem:[#allocation5 + $0x248] sm:$0xff]
    %v340 = vld [vmem:[#allocation5 + $0x250] sm:$0xff]
    %v341 = vld [vmem:[#allocation5 + $0x258] sm:$0xff]
    %v342 = vld [vmem:[#allocation5 + $0x260] sm:$0xff]
    %v343 = vld [vmem:[#allocation5 + $0x268] sm:$0xff]
    %v344 = vld [vmem:[#allocation5 + $0x270] sm:$0xff]
    %v345 = vld [vmem:[#allocation5 + $0x278] sm:$0xff]
    %v346 = vld [vmem:[#allocation5 + $0x280] sm:$0xff]
    %v347 = vld [vmem:[#allocation5 + $0x288] sm:$0xff]
    %v348 = vld [vmem:[#allocation5 + $0x290] sm:$0xff]
    %v349 = vld [vmem:[#allocation5 + $0x298] sm:$0xff]
    %v350 = vld [vmem:[#allocation5 + $0x2a0] sm:$0xff]
    %v351 = vld [vmem:[#allocation5 + $0x2a8] sm:$0xff]
    %v352 = vld [vmem:[#allocation5 + $0x2b0] sm:$0xff]
    %v353 = vld [vmem:[#allocation5 + $0x2b8] sm:$0xff]
    %v354 = vld [vmem:[#allocation5 + $0x2c0] sm:$0xff]
    %v355 = vld [vmem:[#allocation5 + $0x2c8] sm:$0xff]
    %v356 = vld [vmem:[#allocation5 + $0x2d0] sm:$0xff]
    %v357 = vld [vmem:[#allocation5 + $0x2d8] sm:$0xff]
    %v358 = vld [vmem:[#allocation5 + $0x2e0] sm:$0xff]
    %v359 = vld [vmem:[#allocation5 + $0x2e8] sm:$0xff]
    %v360 = vld [vmem:[#allocation5 + $0x2f0] sm:$0xff]
    %v361 = vld [vmem:[#allocation5 + $0x2f8] sm:$0xff]
    %v362 = vld [vmem:[#allocation5 + $0x300] sm:$0xff]
    %v363 = vld [vmem:[#allocation5 + $0x308] sm:$0xff]
    %v364 = vld [vmem:[#allocation5 + $0x310] sm:$0xff]
    %v365 = vld [vmem:[#allocation5 + $0x318] sm:$0xff]
    %v366 = vld [vmem:[#allocation5 + $0x320] sm:$0xff]
    %v367 = vld [vmem:[#allocation5 + $0x328] sm:$0xff]
    %v368 = vld [vmem:[#allocation5 + $0x330] sm:$0xff]
    %v369 = vld [vmem:[#allocation5 + $0x338] sm:$0xff]
    %v370 = vld [vmem:[#allocation5 + $0x340] sm:$0xff]
    %v371 = vld [vmem:[#allocation5 + $0x348] sm:$0xff]
    %v372 = vld [vmem:[#allocation5 + $0x350] sm:$0xff]
    %v373 = vld [vmem:[#allocation5 + $0x358] sm:$0xff]
    %v374 = vld [vmem:[#allocation5 + $0x360] sm:$0xff]
    %v375 = vld [vmem:[#allocation5 + $0x368] sm:$0xff]
    %v376 = vld [vmem:[#allocation5 + $0x370] sm:$0xff]
    %v377 = vld [vmem:[#allocation5 + $0x378] sm:$0xff]
    %v378 = vld [vmem:[#allocation5 + $0x380] sm:$0xff]
    %v379 = vld [vmem:[#allocation5 + $0x388] sm:$0xff]
    %v380 = vld [vmem:[#allocation5 + $0x390] sm:$0xff]
    %v381 = vld [vmem:[#allocation5 + $0x398] sm:$0xff]
    %v382 = vld [vmem:[#allocation5 + $0x3a0] sm:$0xff]
    %v383 = vld [vmem:[#allocation5 + $0x3a8] sm:$0xff]
    %v384 = vld [vmem:[#allocation5 + $0x3b0] sm:$0xff]
    %v385 = vld [vmem:[#allocation5 + $0x3b8] sm:$0xff]
    %v386 = vld [vmem:[#allocation5 + $0x3c0] sm:$0xff]
    %v387 = vld [vmem:[#allocation5 + $0x3c8] sm:$0xff]
    %v388 = vld [vmem:[#allocation5 + $0x3d0] sm:$0xff]
    %v389 = vld [vmem:[#allocation5 + $0x3d8] sm:$0xff]
    %v390 = vld [vmem:[#allocation5 + $0x3e0] sm:$0xff]
    %v391 = vld [vmem:[#allocation5 + $0x3e8] sm:$0xff]
    %v392 = vld [vmem:[#allocation5 + $0x3f0] sm:$0xff]
    %v393 = vld [vmem:[#allocation5 + $0x3f8] sm:$0xff]
    %v394 = vld [vmem:[%s2] sm:$0x3]
    %v396 = vlaneseq
    %v397 = vshrl.u32 %v396, 7
    %v398 = vsub.s32 0, %v397
    %v399 = vrot.slane %v394, %v398
    %v400 = vlaneseq
    %v401 = vshrl.u32 %v400, 7
    %v402 = vsub.s32 1, %v401
    %v403 = vrot.slane %v394, %v402
    %v534 = vunpack.c.l.b16 %v266
    %v535 = vunpack.c.h.b16 %v266
    %v536 = vunpack.c.l.b16 %v267
    %v537 = vunpack.c.h.b16 %v267
    %v538 = vunpack.c.l.b16 %v268
    %v539 = vunpack.c.h.b16 %v268
    %v540 = vunpack.c.l.b16 %v269
    %v541 = vunpack.c.h.b16 %v269
    %v542 = vunpack.c.l.b16 %v270
    %v543 = vunpack.c.h.b16 %v270
    %v544 = vunpack.c.l.b16 %v271
    %v545 = vunpack.c.h.b16 %v271
    %v546 = vunpack.c.l.b16 %v272
    %v547 = vunpack.c.h.b16 %v272
    %v548 = vunpack.c.l.b16 %v273
    %v549 = vunpack.c.h.b16 %v273
    %v550 = vunpack.c.l.b16 %v274
    %v551 = vunpack.c.h.b16 %v274
    %v552 = vunpack.c.l.b16 %v275
    %v553 = vunpack.c.h.b16 %v275
    %v554 = vunpack.c.l.b16 %v276
    %v555 = vunpack.c.h.b16 %v276
    %v556 = vunpack.c.l.b16 %v277
    %v557 = vunpack.c.h.b16 %v277
    %v558 = vunpack.c.l.b16 %v278
    %v559 = vunpack.c.h.b16 %v278
    %v560 = vunpack.c.l.b16 %v279
    %v561 = vunpack.c.h.b16 %v279
    %v562 = vunpack.c.l.b16 %v280
    %v563 = vunpack.c.h.b16 %v280
    %v564 = vunpack.c.l.b16 %v281
    %v565 = vunpack.c.h.b16 %v281
    %v566 = vunpack.c.l.b16 %v282
    %v567 = vunpack.c.h.b16 %v282
    %v568 = vunpack.c.l.b16 %v283
    %v569 = vunpack.c.h.b16 %v283
    %v570 = vunpack.c.l.b16 %v284
    %v571 = vunpack.c.h.b16 %v284
    %v572 = vunpack.c.l.b16 %v285
    %v573 = vunpack.c.h.b16 %v285
    %v574 = vunpack.c.l.b16 %v286
    %v575 = vunpack.c.h.b16 %v286
    %v576 = vunpack.c.l.b16 %v287
    %v577 = vunpack.c.h.b16 %v287
    %v578 = vunpack.c.l.b16 %v288
    %v579 = vunpack.c.h.b16 %v288
    %v580 = vunpack.c.l.b16 %v289
    %v581 = vunpack.c.h.b16 %v289
    %v582 = vunpack.c.l.b16 %v290
    %v583 = vunpack.c.h.b16 %v290
    %v584 = vunpack.c.l.b16 %v291
    %v585 = vunpack.c.h.b16 %v291
    %v586 = vunpack.c.l.b16 %v292
    %v587 = vunpack.c.h.b16 %v292
    %v588 = vunpack.c.l.b16 %v293
    %v589 = vunpack.c.h.b16 %v293
    %v590 = vunpack.c.l.b16 %v294
    %v591 = vunpack.c.h.b16 %v294
    %v592 = vunpack.c.l.b16 %v295
    %v593 = vunpack.c.h.b16 %v295
    %v594 = vunpack.c.l.b16 %v296
    %v595 = vunpack.c.h.b16 %v296
    %v596 = vunpack.c.l.b16 %v297
    %v597 = vunpack.c.h.b16 %v297
    %v598 = vunpack.c.l.b16 %v298
    %v599 = vunpack.c.h.b16 %v298
    %v600 = vunpack.c.l.b16 %v299
    %v601 = vunpack.c.h.b16 %v299
    %v602 = vunpack.c.l.b16 %v300
    %v603 = vunpack.c.h.b16 %v300
    %v604 = vunpack.c.l.b16 %v301
    %v605 = vunpack.c.h.b16 %v301
    %v606 = vunpack.c.l.b16 %v302
    %v607 = vunpack.c.h.b16 %v302
    %v608 = vunpack.c.l.b16 %v303
    %v609 = vunpack.c.h.b16 %v303
    %v610 = vunpack.c.l.b16 %v304
    %v611 = vunpack.c.h.b16 %v304
    %v612 = vunpack.c.l.b16 %v305
    %v613 = vunpack.c.h.b16 %v305
    %v614 = vunpack.c.l.b16 %v306
    %v615 = vunpack.c.h.b16 %v306
    %v616 = vunpack.c.l.b16 %v307
    %v617 = vunpack.c.h.b16 %v307
    %v618 = vunpack.c.l.b16 %v308
    %v619 = vunpack.c.h.b16 %v308
    %v620 = vunpack.c.l.b16 %v309
    %v621 = vunpack.c.h.b16 %v309
    %v622 = vunpack.c.l.b16 %v310
    %v623 = vunpack.c.h.b16 %v310
    %v624 = vunpack.c.l.b16 %v311
    %v625 = vunpack.c.h.b16 %v311
    %v626 = vunpack.c.l.b16 %v312
    %v627 = vunpack.c.h.b16 %v312
    %v628 = vunpack.c.l.b16 %v313
    %v629 = vunpack.c.h.b16 %v313
    %v630 = vunpack.c.l.b16 %v314
    %v631 = vunpack.c.h.b16 %v314
    %v632 = vunpack.c.l.b16 %v315
    %v633 = vunpack.c.h.b16 %v315
    %v634 = vunpack.c.l.b16 %v316
    %v635 = vunpack.c.h.b16 %v316
    %v636 = vunpack.c.l.b16 %v317
    %v637 = vunpack.c.h.b16 %v317
    %v638 = vunpack.c.l.b16 %v318
    %v639 = vunpack.c.h.b16 %v318
    %v640 = vunpack.c.l.b16 %v319
    %v641 = vunpack.c.h.b16 %v319
    %v642 = vunpack.c.l.b16 %v320
    %v643 = vunpack.c.h.b16 %v320
    %v644 = vunpack.c.l.b16 %v321
    %v645 = vunpack.c.h.b16 %v321
    %v646 = vunpack.c.l.b16 %v322
    %v647 = vunpack.c.h.b16 %v322
    %v648 = vunpack.c.l.b16 %v323
    %v649 = vunpack.c.h.b16 %v323
    %v650 = vunpack.c.l.b16 %v324
    %v651 = vunpack.c.h.b16 %v324
    %v652 = vunpack.c.l.b16 %v325
    %v653 = vunpack.c.h.b16 %v325
    %v654 = vunpack.c.l.b16 %v326
    %v655 = vunpack.c.h.b16 %v326
    %v656 = vunpack.c.l.b16 %v327
    %v657 = vunpack.c.h.b16 %v327
    %v658 = vunpack.c.l.b16 %v328
    %v659 = vunpack.c.h.b16 %v328
    %v660 = vunpack.c.l.b16 %v329
    %v661 = vunpack.c.h.b16 %v329
    %v662 = vunpack.c.l.b16 %v330
    %v663 = vunpack.c.h.b16 %v330
    %v664 = vunpack.c.l.b16 %v331
    %v665 = vunpack.c.h.b16 %v331
    %v666 = vunpack.c.l.b16 %v332
    %v667 = vunpack.c.h.b16 %v332
    %v668 = vunpack.c.l.b16 %v333
    %v669 = vunpack.c.h.b16 %v333
    %v670 = vunpack.c.l.b16 %v334
    %v671 = vunpack.c.h.b16 %v334
    %v672 = vunpack.c.l.b16 %v335
    %v673 = vunpack.c.h.b16 %v335
    %v674 = vunpack.c.l.b16 %v336
    %v675 = vunpack.c.h.b16 %v336
    %v676 = vunpack.c.l.b16 %v337
    %v677 = vunpack.c.h.b16 %v337
    %v678 = vunpack.c.l.b16 %v338
    %v679 = vunpack.c.h.b16 %v338
    %v680 = vunpack.c.l.b16 %v339
    %v681 = vunpack.c.h.b16 %v339
    %v682 = vunpack.c.l.b16 %v340
    %v683 = vunpack.c.h.b16 %v340
    %v684 = vunpack.c.l.b16 %v341
    %v685 = vunpack.c.h.b16 %v341
    %v686 = vunpack.c.l.b16 %v342
    %v687 = vunpack.c.h.b16 %v342
    %v688 = vunpack.c.l.b16 %v343
    %v689 = vunpack.c.h.b16 %v343
    %v690 = vunpack.c.l.b16 %v344
    %v691 = vunpack.c.h.b16 %v344
    %v692 = vunpack.c.l.b16 %v345
    %v693 = vunpack.c.h.b16 %v345
    %v694 = vunpack.c.l.b16 %v346
    %v695 = vunpack.c.h.b16 %v346
    %v696 = vunpack.c.l.b16 %v347
    %v697 = vunpack.c.h.b16 %v347
    %v698 = vunpack.c.l.b16 %v348
    %v699 = vunpack.c.h.b16 %v348
    %v700 = vunpack.c.l.b16 %v349
    %v701 = vunpack.c.h.b16 %v349
    %v702 = vunpack.c.l.b16 %v350
    %v703 = vunpack.c.h.b16 %v350
    %v704 = vunpack.c.l.b16 %v351
    %v705 = vunpack.c.h.b16 %v351
    %v706 = vunpack.c.l.b16 %v352
    %v707 = vunpack.c.h.b16 %v352
    %v708 = vunpack.c.l.b16 %v353
    %v709 = vunpack.c.h.b16 %v353
    %v710 = vunpack.c.l.b16 %v354
    %v711 = vunpack.c.h.b16 %v354
    %v712 = vunpack.c.l.b16 %v355
    %v713 = vunpack.c.h.b16 %v355
    %v714 = vunpack.c.l.b16 %v356
    %v715 = vunpack.c.h.b16 %v356
    %v716 = vunpack.c.l.b16 %v357
    %v717 = vunpack.c.h.b16 %v357
    %v718 = vunpack.c.l.b16 %v358
    %v719 = vunpack.c.h.b16 %v358
    %v720 = vunpack.c.l.b16 %v359
    %v721 = vunpack.c.h.b16 %v359
    %v722 = vunpack.c.l.b16 %v360
    %v723 = vunpack.c.h.b16 %v360
    %v724 = vunpack.c.l.b16 %v361
    %v725 = vunpack.c.h.b16 %v361
    %v726 = vunpack.c.l.b16 %v362
    %v727 = vunpack.c.h.b16 %v362
    %v728 = vunpack.c.l.b16 %v363
    %v729 = vunpack.c.h.b16 %v363
    %v730 = vunpack.c.l.b16 %v364
    %v731 = vunpack.c.h.b16 %v364
    %v732 = vunpack.c.l.b16 %v365
    %v733 = vunpack.c.h.b16 %v365
    %v734 = vunpack.c.l.b16 %v366
    %v735 = vunpack.c.h.b16 %v366
    %v736 = vunpack.c.l.b16 %v367
    %v737 = vunpack.c.h.b16 %v367
    %v738 = vunpack.c.l.b16 %v368
    %v739 = vunpack.c.h.b16 %v368
    %v740 = vunpack.c.l.b16 %v369
    %v741 = vunpack.c.h.b16 %v369
    %v742 = vunpack.c.l.b16 %v370
    %v743 = vunpack.c.h.b16 %v370
    %v744 = vunpack.c.l.b16 %v371
    %v745 = vunpack.c.h.b16 %v371
    %v746 = vunpack.c.l.b16 %v372
    %v747 = vunpack.c.h.b16 %v372
    %v748 = vunpack.c.l.b16 %v373
    %v749 = vunpack.c.h.b16 %v373
    %v750 = vunpack.c.l.b16 %v374
    %v751 = vunpack.c.h.b16 %v374
    %v752 = vunpack.c.l.b16 %v375
    %v753 = vunpack.c.h.b16 %v375
    %v754 = vunpack.c.l.b16 %v376
    %v755 = vunpack.c.h.b16 %v376
    %v756 = vunpack.c.l.b16 %v377
    %v757 = vunpack.c.h.b16 %v377
    %v758 = vunpack.c.l.b16 %v378
    %v759 = vunpack.c.h.b16 %v378
    %v760 = vunpack.c.l.b16 %v379
    %v761 = vunpack.c.h.b16 %v379
    %v762 = vunpack.c.l.b16 %v380
    %v763 = vunpack.c.h.b16 %v380
    %v764 = vunpack.c.l.b16 %v381
    %v765 = vunpack.c.h.b16 %v381
    %v766 = vunpack.c.l.b16 %v382
    %v767 = vunpack.c.h.b16 %v382
    %v768 = vunpack.c.l.b16 %v383
    %v769 = vunpack.c.h.b16 %v383
    %v770 = vunpack.c.l.b16 %v384
    %v771 = vunpack.c.h.b16 %v384
    %v772 = vunpack.c.l.b16 %v385
    %v773 = vunpack.c.h.b16 %v385
    %v774 = vunpack.c.l.b16 %v386
    %v775 = vunpack.c.h.b16 %v386
    %v776 = vunpack.c.l.b16 %v387
    %v777 = vunpack.c.h.b16 %v387
    %v778 = vunpack.c.l.b16 %v388
    %v779 = vunpack.c.h.b16 %v388
    %v780 = vunpack.c.l.b16 %v389
    %v781 = vunpack.c.h.b16 %v389
    %v782 = vunpack.c.l.b16 %v390
    %v783 = vunpack.c.h.b16 %v390
    %v784 = vunpack.c.l.b16 %v391
    %v785 = vunpack.c.h.b16 %v391
    %v786 = vunpack.c.l.b16 %v392
    %v787 = vunpack.c.h.b16 %v392
    %v788 = vunpack.c.l.b16 %v393
    %v789 = vunpack.c.h.b16 %v393
    %v790 = vpack.c.b16 %v536, %v534
    %v791 = vpack.c.b16 %v537, %v535
    %v792 = vpack.c.b16 %v540, %v538
    %v793 = vpack.c.b16 %v541, %v539
    %v794 = vpack.c.b16 %v544, %v542
    %v795 = vpack.c.b16 %v545, %v543
    %v796 = vpack.c.b16 %v548, %v546
    %v797 = vpack.c.b16 %v549, %v547
    %v798 = vpack.c.b16 %v552, %v550
    %v799 = vpack.c.b16 %v553, %v551
    %v800 = vpack.c.b16 %v556, %v554
    %v801 = vpack.c.b16 %v557, %v555
    %v802 = vpack.c.b16 %v560, %v558
    %v803 = vpack.c.b16 %v561, %v559
    %v804 = vpack.c.b16 %v564, %v562
    %v805 = vpack.c.b16 %v565, %v563
    %v806 = vpack.c.b16 %v568, %v566
    %v807 = vpack.c.b16 %v569, %v567
    %v808 = vpack.c.b16 %v572, %v570
    %v809 = vpack.c.b16 %v573, %v571
    %v810 = vpack.c.b16 %v576, %v574
    %v811 = vpack.c.b16 %v577, %v575
    %v812 = vpack.c.b16 %v580, %v578
    %v813 = vpack.c.b16 %v581, %v579
    %v814 = vpack.c.b16 %v584, %v582
    %v815 = vpack.c.b16 %v585, %v583
    %v816 = vpack.c.b16 %v588, %v586
    %v817 = vpack.c.b16 %v589, %v587
    %v818 = vpack.c.b16 %v592, %v590
    %v819 = vpack.c.b16 %v593, %v591
    %v820 = vpack.c.b16 %v596, %v594
    %v821 = vpack.c.b16 %v597, %v595
    %v822 = vpack.c.b16 %v600, %v598
    %v823 = vpack.c.b16 %v601, %v599
    %v824 = vpack.c.b16 %v604, %v602
    %v825 = vpack.c.b16 %v605, %v603
    %v826 = vpack.c.b16 %v608, %v606
    %v827 = vpack.c.b16 %v609, %v607
    %v828 = vpack.c.b16 %v612, %v610
    %v829 = vpack.c.b16 %v613, %v611
    %v830 = vpack.c.b16 %v616, %v614
    %v831 = vpack.c.b16 %v617, %v615
    %v832 = vpack.c.b16 %v620, %v618
    %v833 = vpack.c.b16 %v621, %v619
    %v834 = vpack.c.b16 %v624, %v622
    %v835 = vpack.c.b16 %v625, %v623
    %v836 = vpack.c.b16 %v628, %v626
    %v837 = vpack.c.b16 %v629, %v627
    %v838 = vpack.c.b16 %v632, %v630
    %v839 = vpack.c.b16 %v633, %v631
    %v840 = vpack.c.b16 %v636, %v634
    %v841 = vpack.c.b16 %v637, %v635
    %v842 = vpack.c.b16 %v640, %v638
    %v843 = vpack.c.b16 %v641, %v639
    %v844 = vpack.c.b16 %v644, %v642
    %v845 = vpack.c.b16 %v645, %v643
    %v846 = vpack.c.b16 %v648, %v646
    %v847 = vpack.c.b16 %v649, %v647
    %v848 = vpack.c.b16 %v652, %v650
    %v849 = vpack.c.b16 %v653, %v651
    %v850 = vpack.c.b16 %v656, %v654
    %v851 = vpack.c.b16 %v657, %v655
    %v852 = vpack.c.b16 %v660, %v658
    %v853 = vpack.c.b16 %v661, %v659
    %v854 = vpack.c.b16 %v664, %v662
    %v855 = vpack.c.b16 %v665, %v663
    %v856 = vpack.c.b16 %v668, %v666
    %v857 = vpack.c.b16 %v669, %v667
    %v858 = vpack.c.b16 %v672, %v670
    %v859 = vpack.c.b16 %v673, %v671
    %v860 = vpack.c.b16 %v676, %v674
    %v861 = vpack.c.b16 %v677, %v675
    %v862 = vpack.c.b16 %v680, %v678
    %v863 = vpack.c.b16 %v681, %v679
    %v864 = vpack.c.b16 %v684, %v682
    %v865 = vpack.c.b16 %v685, %v683
    %v866 = vpack.c.b16 %v688, %v686
    %v867 = vpack.c.b16 %v689, %v687
    %v868 = vpack.c.b16 %v692, %v690
    %v869 = vpack.c.b16 %v693, %v691
    %v870 = vpack.c.b16 %v696, %v694
    %v871 = vpack.c.b16 %v697, %v695
    %v872 = vpack.c.b16 %v700, %v698
    %v873 = vpack.c.b16 %v701, %v699
    %v874 = vpack.c.b16 %v704, %v702
    %v875 = vpack.c.b16 %v705, %v703
    %v876 = vpack.c.b16 %v708, %v706
    %v877 = vpack.c.b16 %v709, %v707
    %v878 = vpack.c.b16 %v712, %v710
    %v879 = vpack.c.b16 %v713, %v711
    %v880 = vpack.c.b16 %v716, %v714
    %v881 = vpack.c.b16 %v717, %v715
    %v882 = vpack.c.b16 %v720, %v718
    %v883 = vpack.c.b16 %v721, %v719
    %v884 = vpack.c.b16 %v724, %v722
    %v885 = vpack.c.b16 %v725, %v723
    %v886 = vpack.c.b16 %v728, %v726
    %v887 = vpack.c.b16 %v729, %v727
    %v888 = vpack.c.b16 %v732, %v730
    %v889 = vpack.c.b16 %v733, %v731
    %v890 = vpack.c.b16 %v736, %v734
    %v891 = vpack.c.b16 %v737, %v735
    %v892 = vpack.c.b16 %v740, %v738
    %v893 = vpack.c.b16 %v741, %v739
    %v894 = vpack.c.b16 %v744, %v742
    %v895 = vpack.c.b16 %v745, %v743
    %v896 = vpack.c.b16 %v748, %v746
    %v897 = vpack.c.b16 %v749, %v747
    %v898 = vpack.c.b16 %v752, %v750
    %v899 = vpack.c.b16 %v753, %v751
    %v900 = vpack.c.b16 %v756, %v754
    %v901 = vpack.c.b16 %v757, %v755
    %v902 = vpack.c.b16 %v760, %v758
    %v903 = vpack.c.b16 %v761, %v759
    %v904 = vpack.c.b16 %v764, %v762
    %v905 = vpack.c.b16 %v765, %v763
    %v906 = vpack.c.b16 %v768, %v766
    %v907 = vpack.c.b16 %v769, %v767
    %v908 = vpack.c.b16 %v772, %v770
    %v909 = vpack.c.b16 %v773, %v771
    %v910 = vpack.c.b16 %v776, %v774
    %v911 = vpack.c.b16 %v777, %v775
    %v912 = vpack.c.b16 %v780, %v778
    %v913 = vpack.c.b16 %v781, %v779
    %v914 = vpack.c.b16 %v784, %v782
    %v915 = vpack.c.b16 %v785, %v783
    %v916 = vpack.c.b16 %v788, %v786
    %v917 = vpack.c.b16 %v789, %v787
    %1046 = vmatprep.subr.bf16.mxu0 %v791
    %1047 = vmatpush1.bf16.msra.mxu0 %v790
    %1048 = vmatprep.subr.bf16.mxu0 %v793
    %1049 = vmatpush1.bf16.msra.mxu0 %v792
    %1050 = vmatprep.subr.bf16.mxu0 %v795
    %1051 = vmatpush1.bf16.msra.mxu0 %v794
    %1052 = vmatprep.subr.bf16.mxu0 %v797
    %1053 = vmatpush1.bf16.msra.mxu0 %v796
    %1054 = vmatprep.subr.bf16.mxu0 %v799
    %1055 = vmatpush1.bf16.msra.mxu0 %v798
    %1056 = vmatprep.subr.bf16.mxu0 %v801
    %1057 = vmatpush1.bf16.msra.mxu0 %v800
    %1058 = vmatprep.subr.bf16.mxu0 %v803
    %1059 = vmatpush1.bf16.msra.mxu0 %v802
    %1060 = vmatprep.subr.bf16.mxu0 %v805
    %1061 = vmatpush1.bf16.msra.mxu0 %v804
    %1062 = vmatprep.subr.bf16.mxu0 %v807
    %1063 = vmatpush1.bf16.msra.mxu0 %v806
    %1064 = vmatprep.subr.bf16.mxu0 %v809
    %1065 = vmatpush1.bf16.msra.mxu0 %v808
    %1066 = vmatprep.subr.bf16.mxu0 %v811
    %1067 = vmatpush1.bf16.msra.mxu0 %v810
    %1068 = vmatprep.subr.bf16.mxu0 %v813
    %1069 = vmatpush1.bf16.msra.mxu0 %v812
    %1070 = vmatprep.subr.bf16.mxu0 %v815
    %1071 = vmatpush1.bf16.msra.mxu0 %v814
    %1072 = vmatprep.subr.bf16.mxu0 %v817
    %1073 = vmatpush1.bf16.msra.mxu0 %v816
    %1074 = vmatprep.subr.bf16.mxu0 %v819
    %1075 = vmatpush1.bf16.msra.mxu0 %v818
    %1076 = vmatprep.subr.bf16.mxu0 %v821
    %1077 = vmatpush1.bf16.msra.mxu0 %v820
    %1078 = vmatprep.mubr.bf16.mxu0 %v259
    %1079 = vmatmul.mubr.bf16.gmra.mrb[0].mxu0 %v258
    %v1080 = vpop.f32.mrb[0].mxu0
    %v1081 = vadd.f32 %v399, %v1080
    %v1082 = vpop.f32.mrb[0].mxu0
    %v1083 = vadd.f32 %v403, %v1082
    %v1084 = vpop.f32.mrb[0].mxu0
    %v1085 = vadd.f32 %v399, %v1084
    %v1086 = vpop.f32.mrb[0].mxu0
    %v1087 = vadd.f32 %v403, %v1086
    %1088 = vdwg.mxu0
    %1089 = vmatprep.subr.bf16.mxu0 %v823
    %1090 = vmatpush1.bf16.msra.mxu0 %v822
    %1091 = vmatprep.subr.bf16.mxu0 %v825
    %1092 = vmatpush1.bf16.msra.mxu0 %v824
    %1093 = vmatprep.subr.bf16.mxu0 %v827
    %1094 = vmatpush1.bf16.msra.mxu0 %v826
    %1095 = vmatprep.subr.bf16.mxu0 %v829
    %1096 = vmatpush1.bf16.msra.mxu0 %v828
    %1097 = vmatprep.subr.bf16.mxu0 %v831
    %1098 = vmatpush1.bf16.msra.mxu0 %v830
    %1099 = vmatprep.subr.bf16.mxu0 %v833
    %1100 = vmatpush1.bf16.msra.mxu0 %v832
    %1101 = vmatprep.subr.bf16.mxu0 %v835
    %1102 = vmatpush1.bf16.msra.mxu0 %v834
    %1103 = vmatprep.subr.bf16.mxu0 %v837
    %1104 = vmatpush1.bf16.msra.mxu0 %v836
    %1105 = vmatprep.subr.bf16.mxu0 %v839
    %1106 = vmatpush1.bf16.msra.mxu0 %v838
    %1107 = vmatprep.subr.bf16.mxu0 %v841
    %1108 = vmatpush1.bf16.msra.mxu0 %v840
    %1109 = vmatprep.subr.bf16.mxu0 %v843
    %1110 = vmatpush1.bf16.msra.mxu0 %v842
    %1111 = vmatprep.subr.bf16.mxu0 %v845
    %1112 = vmatpush1.bf16.msra.mxu0 %v844
    %1113 = vmatprep.subr.bf16.mxu0 %v847
    %1114 = vmatpush1.bf16.msra.mxu0 %v846
    %1115 = vmatprep.subr.bf16.mxu0 %v849
    %1116 = vmatpush1.bf16.msra.mxu0 %v848
    %1117 = vmatprep.subr.bf16.mxu0 %v851
    %1118 = vmatpush1.bf16.msra.mxu0 %v850
    %1119 = vmatprep.subr.bf16.mxu0 %v853
    %1120 = vmatpush1.bf16.msra.mxu0 %v852
    %1121 = vmatprep.mubr.bf16.mxu0 %v261
    %1122 = vmatmul.mubr.bf16.gmra.mrb[0].mxu0 %v260
    %v1123 = vpop.f32.mrb[0].mxu0
    %v1124 = vadd.f32 %v1081, %v1123
    %v1125 = vpop.f32.mrb[0].mxu0
    %v1126 = vadd.f32 %v1083, %v1125
    %v1127 = vpop.f32.mrb[0].mxu0
    %v1128 = vadd.f32 %v1085, %v1127
    %v1129 = vpop.f32.mrb[0].mxu0
    %v1130 = vadd.f32 %v1087, %v1129
    %1131 = vdwg.mxu0
    %1132 = vmatprep.subr.bf16.mxu0 %v855
    %1133 = vmatpush1.bf16.msra.mxu0 %v854
    %1134 = vmatprep.subr.bf16.mxu0 %v857
    %1135 = vmatpush1.bf16.msra.mxu0 %v856
    %1136 = vmatprep.subr.bf16.mxu0 %v859
    %1137 = vmatpush1.bf16.msra.mxu0 %v858
    %1138 = vmatprep.subr.bf16.mxu0 %v861
    %1139 = vmatpush1.bf16.msra.mxu0 %v860
    %1140 = vmatprep.subr.bf16.mxu0 %v863
    %1141 = vmatpush1.bf16.msra.mxu0 %v862
    %1142 = vmatprep.subr.bf16.mxu0 %v865
    %1143 = vmatpush1.bf16.msra.mxu0 %v864
    %1144 = vmatprep.subr.bf16.mxu0 %v867
    %1145 = vmatpush1.bf16.msra.mxu0 %v866
    %1146 = vmatprep.subr.bf16.mxu0 %v869
    %1147 = vmatpush1.bf16.msra.mxu0 %v868
    %1148 = vmatprep.subr.bf16.mxu0 %v871
    %1149 = vmatpush1.bf16.msra.mxu0 %v870
    %1150 = vmatprep.subr.bf16.mxu0 %v873
    %1151 = vmatpush1.bf16.msra.mxu0 %v872
    %1152 = vmatprep.subr.bf16.mxu0 %v875
    %1153 = vmatpush1.bf16.msra.mxu0 %v874
    %1154 = vmatprep.subr.bf16.mxu0 %v877
    %1155 = vmatpush1.bf16.msra.mxu0 %v876
    %1156 = vmatprep.subr.bf16.mxu0 %v879
    %1157 = vmatpush1.bf16.msra.mxu0 %v878
    %1158 = vmatprep.subr.bf16.mxu0 %v881
    %1159 = vmatpush1.bf16.msra.mxu0 %v880
    %1160 = vmatprep.subr.bf16.mxu0 %v883
    %1161 = vmatpush1.bf16.msra.mxu0 %v882
    %1162 = vmatprep.subr.bf16.mxu0 %v885
    %1163 = vmatpush1.bf16.msra.mxu0 %v884
    %1164 = vmatprep.mubr.bf16.mxu0 %v263
    %1165 = vmatmul.mubr.bf16.gmra.mrb[0].mxu0 %v262
    %v1166 = vpop.f32.mrb[0].mxu0
    %v1167 = vadd.f32 %v1124, %v1166
    %v1168 = vpop.f32.mrb[0].mxu0
    %v1169 = vadd.f32 %v1126, %v1168
    %v1170 = vpop.f32.mrb[0].mxu0
    %v1171 = vadd.f32 %v1128, %v1170
    %v1172 = vpop.f32.mrb[0].mxu0
    %v1173 = vadd.f32 %v1130, %v1172
    %1174 = vdwg.mxu0
    %1175 = vmatprep.subr.bf16.mxu0 %v887
    %1176 = vmatpush1.bf16.msra.mxu0 %v886
    %1177 = vmatprep.subr.bf16.mxu0 %v889
    %1178 = vmatpush1.bf16.msra.mxu0 %v888
    %1179 = vmatprep.subr.bf16.mxu0 %v891
    %1180 = vmatpush1.bf16.msra.mxu0 %v890
    %1181 = vmatprep.subr.bf16.mxu0 %v893
    %1182 = vmatpush1.bf16.msra.mxu0 %v892
    %1183 = vmatprep.subr.bf16.mxu0 %v895
    %1184 = vmatpush1.bf16.msra.mxu0 %v894
    %1185 = vmatprep.subr.bf16.mxu0 %v897
    %1186 = vmatpush1.bf16.msra.mxu0 %v896
    %1187 = vmatprep.subr.bf16.mxu0 %v899
    %1188 = vmatpush1.bf16.msra.mxu0 %v898
    %1189 = vmatprep.subr.bf16.mxu0 %v901
    %1190 = vmatpush1.bf16.msra.mxu0 %v900
    %1191 = vmatprep.subr.bf16.mxu0 %v903
    %1192 = vmatpush1.bf16.msra.mxu0 %v902
    %1193 = vmatprep.subr.bf16.mxu0 %v905
    %1194 = vmatpush1.bf16.msra.mxu0 %v904
    %1195 = vmatprep.subr.bf16.mxu0 %v907
    %1196 = vmatpush1.bf16.msra.mxu0 %v906
    %1197 = vmatprep.subr.bf16.mxu0 %v909
    %1198 = vmatpush1.bf16.msra.mxu0 %v908
    %1199 = vmatprep.subr.bf16.mxu0 %v911
    %1200 = vmatpush1.bf16.msra.mxu0 %v910
    %1201 = vmatprep.subr.bf16.mxu0 %v913
    %1202 = vmatpush1.bf16.msra.mxu0 %v912
    %1203 = vmatprep.subr.bf16.mxu0 %v915
    %1204 = vmatpush1.bf16.msra.mxu0 %v914
    %1205 = vmatprep.subr.bf16.mxu0 %v917
    %1206 = vmatpush1.bf16.msra.mxu0 %v916
    %1207 = vmatprep.mubr.bf16.mxu0 %v265
    %1208 = vmatmul.mubr.bf16.gmra.mrb[0].mxu0 %v264
    %v1209 = vpop.f32.mrb[0].mxu0
    %v1210 = vadd.f32 %v1167, %v1209
    %v1211 = vpop.f32.mrb[0].mxu0
    %v1212 = vadd.f32 %v1169, %v1211
    %v1213 = vpop.f32.mrb[0].mxu0
    %v1214 = vadd.f32 %v1171, %v1213
    %v1215 = vpop.f32.mrb[0].mxu0
    %v1216 = vadd.f32 %v1173, %v1215
    %1217 = vdwg.mxu0
    %v1218 = vmax.f32 %v1210, 0.0
    %v1219 = vmax.f32 %v1212, 0.0
    %v1220 = vmax.f32 %v1214, 0.0
    %v1221 = vmax.f32 %v1216, 0.0
    %v1222 = vpack.c.bf16 %v1220, %v1218
    %v1223 = vpack.c.bf16 %v1221, %v1219
    %v1226 = vcombine.low %v1222, %v1223
    %v1227 = vcombine.high %v1222, %v1223
    %v1229 = vunpack.c.l.s4 1966171168
    %v1230 = vunpack.c.0.s8 %v1229
    %v1231 = vlaneseq
    %v1232 = vshrl.u32 %v1231, 7
    %v1233 = vsub.s32 %v1230, %v1232
    %v1234 = vrot.slane %v1226, %v1233
    %v1236 = vunpack.c.l.s4 1966171168
    %v1237 = vunpack.c.0.s8 %v1236
    %v1238 = vlaneseq
    %v1239 = vshrl.u32 %v1238, 7
    %v1240 = vsub.s32 %v1237, %v1239
    %v1241 = vrot.slane %v1227, %v1240
    %v1242 = vcombine.high %v1234, %v1234
    %v1243 = vcombine.high %v1241, %v1241
    %v1245 = vunpack.c.l.s4 1966171168
    %v1246 = vunpack.c.0.s8 %v1245
    %v1247 = vlaneseq
    %v1248 = vshrl.u32 %v1247, 7
    %v1249 = vsub.s32 %v1246, %v1248
    %v1250 = vrot.slane %v1234, %v1249
    %v1252 = vunpack.c.l.s4 1966171168
    %v1253 = vunpack.c.0.s8 %v1252
    %v1254 = vlaneseq
    %v1255 = vshrl.u32 %v1254, 7
    %v1256 = vsub.s32 %v1253, %v1255
    %v1257 = vrot.slane %v1241, %v1256
    %v1259 = vunpack.c.l.s4 1966171168
    %v1260 = vunpack.c.0.s8 %v1259
    %v1261 = vlaneseq
    %v1262 = vshrl.u32 %v1261, 7
    %v1263 = vsub.s32 %v1260, %v1262
    %v1264 = vrot.slane %v1242, %v1263
    %v1266 = vunpack.c.l.s4 1966171168
    %v1267 = vunpack.c.0.s8 %v1266
    %v1268 = vlaneseq
    %v1269 = vshrl.u32 %v1268, 7
    %v1270 = vsub.s32 %v1267, %v1269
    %v1271 = vrot.slane %v1243, %v1270
    %v1272 = vcombine.high %v1250, %v1250
    %v1273 = vcombine.high %v1257, %v1257
    %v1274 = vcombine.high %v1264, %v1264
    %v1275 = vcombine.high %v1271, %v1271
    %1284 = vst [vmem:[#allocation9] sm:$0x3] %v1250
    %1285 = vst [vmem:[#allocation9 + $0x2] sm:$0x3] %v1264
    %1286 = vst [vmem:[#allocation9 + $0x4] sm:$0x3] %v1272
    %1287 = vst [vmem:[#allocation9 + $0x6] sm:$0x3] %v1274
    %1288 = vst [vmem:[#allocation9 + $0x8] sm:$0x3] %v1257
    %1289 = vst [vmem:[#allocation9 + $0xa] sm:$0x3] %v1271
    %1290 = vst [vmem:[#allocation9 + $0xc] sm:$0x3] %v1273
    %1291 = vst [vmem:[#allocation9 + $0xe] sm:$0x3] %v1275
    %v1292 = vld [vmem:[#allocation7] sm:$0xf]
    %v1293 = vld [vmem:[#allocation7 + $0x4] sm:$0xf]
    %v1294 = vld [vmem:[#allocation7 + $0x8] sm:$0xf]
    %v1295 = vld [vmem:[#allocation7 + $0xc] sm:$0xf]
    %v1296 = vld [vmem:[#allocation7 + $0x10] sm:$0xf]
    %v1297 = vld [vmem:[#allocation7 + $0x14] sm:$0xf]
    %v1298 = vld [vmem:[#allocation7 + $0x18] sm:$0xf]
    %v1299 = vld [vmem:[#allocation7 + $0x1c] sm:$0xf]
    %v1300 = vld [vmem:[#allocation7 + $0x20] sm:$0xf]
    %v1301 = vld [vmem:[#allocation7 + $0x24] sm:$0xf]
    %v1302 = vld [vmem:[#allocation7 + $0x28] sm:$0xf]
    %v1303 = vld [vmem:[#allocation7 + $0x2c] sm:$0xf]
    %v1304 = vld [vmem:[#allocation7 + $0x30] sm:$0xf]
    %v1305 = vld [vmem:[#allocation7 + $0x34] sm:$0xf]
    %v1306 = vld [vmem:[#allocation7 + $0x38] sm:$0xf]
    %v1307 = vld [vmem:[#allocation7 + $0x3c] sm:$0xf]
    %v1308 = vld [vmem:[#allocation7 + $0x40] sm:$0xf]
    %v1309 = vld [vmem:[#allocation7 + $0x44] sm:$0xf]
    %v1310 = vld [vmem:[#allocation7 + $0x48] sm:$0xf]
    %v1311 = vld [vmem:[#allocation7 + $0x4c] sm:$0xf]
    %v1312 = vld [vmem:[#allocation7 + $0x50] sm:$0xf]
    %v1313 = vld [vmem:[#allocation7 + $0x54] sm:$0xf]
    %v1314 = vld [vmem:[#allocation7 + $0x58] sm:$0xf]
    %v1315 = vld [vmem:[#allocation7 + $0x5c] sm:$0xf]
    %v1316 = vld [vmem:[#allocation7 + $0x60] sm:$0xf]
    %v1317 = vld [vmem:[#allocation7 + $0x64] sm:$0xf]
    %v1318 = vld [vmem:[#allocation7 + $0x68] sm:$0xf]
    %v1319 = vld [vmem:[#allocation7 + $0x6c] sm:$0xf]
    %v1320 = vld [vmem:[#allocation7 + $0x70] sm:$0xf]
    %v1321 = vld [vmem:[#allocation7 + $0x74] sm:$0xf]
    %v1322 = vld [vmem:[#allocation7 + $0x78] sm:$0xf]
    %v1323 = vld [vmem:[#allocation7 + $0x7c] sm:$0xf]
    %v1324 = vld [vmem:[%s4] sm:$0x1]
    %v1326 = vlaneseq
    %v1327 = vshrl.u32 %v1326, 7
    %v1328 = vsub.s32 0, %v1327
    %v1329 = vrot.slane %v1324, %v1328
    %v1363 = vunpack.c.l.b16 %v1292
    %v1364 = vunpack.c.l.b16 %v1293
    %v1365 = vunpack.c.l.b16 %v1294
    %v1366 = vunpack.c.l.b16 %v1295
    %v1367 = vunpack.c.l.b16 %v1296
    %v1368 = vunpack.c.l.b16 %v1297
    %v1369 = vunpack.c.l.b16 %v1298
    %v1370 = vunpack.c.l.b16 %v1299
    %v1371 = vunpack.c.l.b16 %v1300
    %v1372 = vunpack.c.l.b16 %v1301
    %v1373 = vunpack.c.l.b16 %v1302
    %v1374 = vunpack.c.l.b16 %v1303
    %v1375 = vunpack.c.l.b16 %v1304
    %v1376 = vunpack.c.l.b16 %v1305
    %v1377 = vunpack.c.l.b16 %v1306
    %v1378 = vunpack.c.l.b16 %v1307
    %v1379 = vunpack.c.l.b16 %v1308
    %v1380 = vunpack.c.l.b16 %v1309
    %v1381 = vunpack.c.l.b16 %v1310
    %v1382 = vunpack.c.l.b16 %v1311
    %v1383 = vunpack.c.l.b16 %v1312
    %v1384 = vunpack.c.l.b16 %v1313
    %v1385 = vunpack.c.l.b16 %v1314
    %v1386 = vunpack.c.l.b16 %v1315
    %v1387 = vunpack.c.l.b16 %v1316
    %v1388 = vunpack.c.l.b16 %v1317
    %v1389 = vunpack.c.l.b16 %v1318
    %v1390 = vunpack.c.l.b16 %v1319
    %v1391 = vunpack.c.l.b16 %v1320
    %v1392 = vunpack.c.l.b16 %v1321
    %v1393 = vunpack.c.l.b16 %v1322
    %v1394 = vunpack.c.l.b16 %v1323
    %v1395 = vpack.c.b16 %v1364, %v1363
    %v1396 = vpack.c.b16 %v1366, %v1365
    %v1397 = vpack.c.b16 %v1368, %v1367
    %v1398 = vpack.c.b16 %v1370, %v1369
    %v1399 = vpack.c.b16 %v1372, %v1371
    %v1400 = vpack.c.b16 %v1374, %v1373
    %v1401 = vpack.c.b16 %v1376, %v1375
    %v1402 = vpack.c.b16 %v1378, %v1377
    %v1403 = vpack.c.b16 %v1380, %v1379
    %v1404 = vpack.c.b16 %v1382, %v1381
    %v1405 = vpack.c.b16 %v1384, %v1383
    %v1406 = vpack.c.b16 %v1386, %v1385
    %v1407 = vpack.c.b16 %v1388, %v1387
    %v1408 = vpack.c.b16 %v1390, %v1389
    %v1409 = vpack.c.b16 %v1392, %v1391
    %v1410 = vpack.c.b16 %v1394, %v1393
    %1427 = vmatprep.subr.bf16.mxu0 0
    %1428 = vmatpush1.bf16.msra.mxu0 %v1395
    %1429 = vmatprep.subr.bf16.mxu0 0
    %1430 = vmatpush1.bf16.msra.mxu0 %v1396
    %1431 = vmatprep.subr.bf16.mxu0 0
    %1432 = vmatpush1.bf16.msra.mxu0 %v1397
    %1433 = vmatprep.subr.bf16.mxu0 0
    %1434 = vmatpush1.bf16.msra.mxu0 %v1398
    %1435 = vmatprep.subr.bf16.mxu0 0
    %1436 = vmatpush1.bf16.msra.mxu0 %v1399
    %1437 = vmatprep.subr.bf16.mxu0 0
    %1438 = vmatpush1.bf16.msra.mxu0 %v1400
    %1439 = vmatprep.subr.bf16.mxu0 0
    %1440 = vmatpush1.bf16.msra.mxu0 %v1401
    %1441 = vmatprep.subr.bf16.mxu0 0
    %1442 = vmatpush1.bf16.msra.mxu0 %v1402
    %1443 = vmatprep.subr.bf16.mxu0 0
    %1444 = vmatpush1.bf16.msra.mxu0 %v1403
    %1445 = vmatprep.subr.bf16.mxu0 0
    %1446 = vmatpush1.bf16.msra.mxu0 %v1404
    %1447 = vmatprep.subr.bf16.mxu0 0
    %1448 = vmatpush1.bf16.msra.mxu0 %v1405
    %1449 = vmatprep.subr.bf16.mxu0 0
    %1450 = vmatpush1.bf16.msra.mxu0 %v1406
    %1451 = vmatprep.subr.bf16.mxu0 0
    %1452 = vmatpush1.bf16.msra.mxu0 %v1407
    %1453 = vmatprep.subr.bf16.mxu0 0
    %1454 = vmatpush1.bf16.msra.mxu0 %v1408
    %1455 = vmatprep.subr.bf16.mxu0 0
    %1456 = vmatpush1.bf16.msra.mxu0 %v1409
    %1457 = vmatprep.subr.bf16.mxu0 0
    %1458 = vmatpush1.bf16.msra.mxu0 %v1410
    %1459 = vmatprep.mubr.bf16.mxu0 %v1223
    %1460 = vmatmul.mubr.bf16.gmra.mrb[0].mxu0 %v1222
    %v1461 = vpop.f32.mrb[0].mxu0
    %v1462 = vadd.f32 %v1329, %v1461
    %v1463 = vpop.f32.mrb[0].mxu0
    %v1464 = vpop.f32.mrb[0].mxu0
    %v1465 = vadd.f32 %v1329, %v1464
    %v1466 = vpop.f32.mrb[0].mxu0
    %1467 = vdwg.mxu0
    %v1468 = vpack.c.bf16 %v1465, %v1462
    %v1470 = vcombine.high %v1468, %v1468
    %v1472 = vunpack.c.l.s4 1966171168
    %v1473 = vunpack.c.0.s8 %v1472
    %v1474 = vlaneseq
    %v1475 = vshrl.u32 %v1474, 7
    %v1476 = vsub.s32 %v1473, %v1475
    %v1477 = vrot.slane %v1468, %v1476
    %v1479 = vunpack.c.l.s4 1966171168
    %v1480 = vunpack.c.0.s8 %v1479
    %v1481 = vlaneseq
    %v1482 = vshrl.u32 %v1481, 7
    %v1483 = vsub.s32 %v1480, %v1482
    %v1484 = vrot.slane %v1470, %v1483
    %v1485 = vcombine.high %v1477, %v1477
    %v1486 = vcombine.high %v1484, %v1484
    %v1488 = vunpack.c.l.s4 1966171168
    %v1489 = vunpack.c.0.s8 %v1488
    %v1490 = vlaneseq
    %v1491 = vshrl.u32 %v1490, 7
    %v1492 = vsub.s32 %v1489, %v1491
    %v1493 = vrot.slane %v1477, %v1492
    %v1495 = vunpack.c.l.s4 1966171168
    %v1496 = vunpack.c.0.s8 %v1495
    %v1497 = vlaneseq
    %v1498 = vshrl.u32 %v1497, 7
    %v1499 = vsub.s32 %v1496, %v1498
    %v1500 = vrot.slane %v1484, %v1499
    %v1502 = vunpack.c.l.s4 1966171168
    %v1503 = vunpack.c.0.s8 %v1502
    %v1504 = vlaneseq
    %v1505 = vshrl.u32 %v1504, 7
    %v1506 = vsub.s32 %v1503, %v1505
    %v1507 = vrot.slane %v1485, %v1506
    %v1509 = vunpack.c.l.s4 1966171168
    %v1510 = vunpack.c.0.s8 %v1509
    %v1511 = vlaneseq
    %v1512 = vshrl.u32 %v1511, 7
    %v1513 = vsub.s32 %v1510, %v1512
    %v1514 = vrot.slane %v1486, %v1513
    %v1515 = vcombine.high %v1493, %v1493
    %v1516 = vcombine.high %v1500, %v1500
    %v1517 = vcombine.high %v1507, %v1507
    %v1518 = vcombine.high %v1514, %v1514
    %1527 = vst [vmem:[#allocation8] sm:$0x1] %v1493
    %1528 = vst [vmem:[#allocation8 + $0x1] sm:$0x1] %v1507
    %1529 = vst [vmem:[#allocation8 + $0x2] sm:$0x1] %v1515
    %1530 = vst [vmem:[#allocation8 + $0x3] sm:$0x1] %v1517
    %1531 = vst [vmem:[#allocation8 + $0x4] sm:$0x1] %v1500
    %1532 = vst [vmem:[#allocation8 + $0x5] sm:$0x1] %v1514
    %1533 = vst [vmem:[#allocation8 + $0x6] sm:$0x1] %v1516
    %1534 = vst [vmem:[#allocation8 + $0x7] sm:$0x1] %v1518
    // Predicated region
    $region34: #{tpu_custom_call.1} parent=1 // pred_check
      _
    $region35: #{tpu_custom_call.1} parent=1 // pred_check_branch
      %1536 = sbr.rel (0) target = $region37
    $region36: #{tpu_custom_call.1} parent=1 // pred_region
      %s1538 = ssub.s32 128, 16
      %1539 = vsyncadd [#allocation4], %s1538
      %s1540 = sshll.u32 [#allocation8], 4
      %s1541 = int_to_ptr.vmem [resolvable:$true] %s1540
      %1546 = dma.vmem_to_hbm [thread:$0]  %s1541, 16, %s5, [#allocation4], 16, 16, 1
    $region37: #{tpu_custom_call.1} parent=1 // pred_fallthru
      _
    // Predicated region
    $region38: #{tpu_custom_call.1} parent=1 // pred_check
      _
    $region39: #{tpu_custom_call.1} parent=1 // pred_check_branch
      %1548 = sbr.rel (0) target = $region41
    $region40: #{tpu_custom_call.1} parent=1 // pred_region
      %s1550 = ssub.s32 256, 32
      %1551 = vsyncadd [#allocation10], %s1550
      %s1552 = sshll.u32 [#allocation9], 4
      %s1553 = int_to_ptr.vmem [resolvable:$true] %s1552
      %1558 = dma.vmem_to_hbm [thread:$0]  %s1553, 32, %s6, [#allocation10], 32, 32, 2
    $region41: #{tpu_custom_call.1} parent=1 // pred_fallthru
      _
    // Predicated region
    $region42: #{tpu_custom_call.1} parent=1 // pred_check
      _
    $region43: #{tpu_custom_call.1} parent=1 // pred_check_branch
      %1560 = sbr.rel (0) target = $region45
    $region44: #{tpu_custom_call.1} parent=1 // pred_region
      %1561 = dma.done [#allocation4], 128
    $region45: #{tpu_custom_call.1} parent=1 // pred_fallthru
      _
    // Predicated region
    $region46: #{tpu_custom_call.1} parent=1 // pred_check
      _
    $region47: #{tpu_custom_call.1} parent=1 // pred_check_branch
      %1563 = sbr.rel (0) target = $region49
    $region48: #{tpu_custom_call.1} parent=1 // pred_region
      %1564 = dma.done [#allocation10], 256
    $region49: #{tpu_custom_call.1} parent=1 // pred_fallthru
      _
    %1565 = vsyncpa [#allocation3], 1
    %1566 = vsyncpa [#allocation6], 1
    %1567 = vsyncpa [#allocation4], 1
    %1568 = vsyncpa [#allocation10], 1

</llo_original>
